<compile_context>
chip_gen: v7x
topology: tpu7x:2x2x1
jax: 0.10.0
libtpu: 0.0.40
codegen_flags: <defaults>
</compile_context>

<pallas_src>
import functools

import jax
import jax.numpy as jnp
from jax import lax
from jax.experimental import pallas as pl
from jax.experimental.pallas import tpu as pltpu

HIDDEN = 10
LANE = 128

# Hard cap on the batch tile.  Input blocks keep batch on sublanes with a
# narrow feature minor dim, so VMEM lane-pads each row to 128 lanes; at 8192
# rows the double-buffered s/a buffers are ~16 MiB plus ~2 MiB of in-kernel
# temporaries, comfortably under the 32 MiB scoped-VMEM limit requested below
# on every generation (v5e / v6e / v7x).
MAX_TILE_B = 8192
VMEM_LIMIT_BYTES = 32 * 1024 * 1024


def _round_up(x, m):
    return (x + m - 1) // m * m


def _cdiv(a, b):
    return (a + b - 1) // b


def _critic_kernel(s_ref, a_ref, w1_ref, w2_ref, bh_ref, w3_ref, b3_ref, out_ref):
    # s_ref : (TILE_B, s_size)   state tile, natural batch-major layout
    # a_ref : (TILE_B, a_size)   action tile
    # w1_ref: (HIDDEN, s_size)   fc1 weight (VMEM-resident across the grid)
    # w2_ref: (HIDDEN, a_size)   fc2 weight (VMEM-resident)
    # bh_ref: (HIDDEN, 1)        fused bias b1 + b2
    # w3_ref: (HIDDEN, 1)        output weight as a column vector
    # b3_ref: (1,)               output bias scalar, in SMEM
    # out   : (1, TILE_B)        lane-dense output slab
    dims = (((1,), (1,)), ((), ()))  # contract feature axes -> (HIDDEN, TILE_B)
    h = lax.dot_general(w1_ref[...], s_ref[...], dims,
                        preferred_element_type=jnp.float32)
    h = h + lax.dot_general(w2_ref[...], a_ref[...], dims,
                            preferred_element_type=jnp.float32)
    q = jnp.maximum(h + bh_ref[...], 0.0)            # relu(fc1(s) + fc2(a))
    # 10 -> 1 projection as VPU multiply + sublane (XLU) reduce; avoids an
    # N=1 MXU matmul and keeps the store lane-dense.
    out_ref[...] = jnp.sum(q * w3_ref[...], axis=0, keepdims=True) + b3_ref[0]


@functools.partial(jax.jit, static_argnames=("tile_b", "compute_dtype"))
def critic_forward(s, a, params, *, tile_b=MAX_TILE_B, compute_dtype=jnp.float32):
    """s: [B, s_size], a: [B, a_size] -> [B, 1] float32.

    Params are in PyTorch layout: w1 (10, s_size), b1 (10,), w2 (10, a_size),
    b2 (10,), w3 (1, 10), b3 (1,).  Set compute_dtype=jnp.bfloat16 to halve
    input HBM traffic (accumulation stays f32) if the critic tolerates it.
    """
    w1, b1, w2, b2, w3, b3 = params
    B, s_size = s.shape
    a_size = a.shape[1]
    K = s_size + a_size
    itemsize = jnp.dtype(compute_dtype).itemsize

    # ---- batch tiling: multiple of 128 lanes, VMEM-capped, >=2 grid steps
    # when possible (v7x dual-TC), padding bounded to <128 rows per step. ----
    b_pad_min = _round_up(B, LANE)
    tile_b = min(int(tile_b), MAX_TILE_B, b_pad_min)
    tile_b = max(LANE, (tile_b // LANE) * LANE)          # Mosaic needs 128-aligned lanes
    n_steps = _cdiv(b_pad_min, tile_b)
    if n_steps == 1 and b_pad_min >= 2 * LANE:
        n_steps = 2                                       # let v7x shard across both TCs
    tile_b = _round_up(_cdiv(b_pad_min, n_steps), LANE)
    b_pad = n_steps * tile_b

    s_c = s.astype(compute_dtype)
    a_c = a.astype(compute_dtype)
    if b_pad != B:
        # Only wrapper-side copy left: zero rows up to the tile boundary.
        # Padded lanes compute relu(b1+b2)·w3 + b3 (garbage) and are sliced
        # off below — do not "optimize" the [:B] slice away.
        s_c = jnp.pad(s_c, ((0, b_pad - B), (0, 0)))
        a_c = jnp.pad(a_c, ((0, b_pad - B), (0, 0)))

    w1_c = w1.astype(compute_dtype)
    w2_c = w2.astype(compute_dtype)
    b_h = (b1 + b2).astype(jnp.float32).reshape(HIDDEN, 1)
    w3_col = w3.astype(jnp.float32).reshape(HIDDEN, 1)
    b3_s = b3.astype(jnp.float32).reshape(1)

    flops = 2 * b_pad * HIDDEN * K + 4 * b_pad * HIDDEN
    bytes_accessed = itemsize * b_pad * K + 4 * b_pad + 4 * HIDDEN * (K + 2) + 4

    out = pl.pallas_call(
        _critic_kernel,
        out_shape=jax.ShapeDtypeStruct((1, b_pad), jnp.float32),
        grid_spec=pltpu.PrefetchScalarGridSpec(
            num_scalar_prefetch=0,
            grid=(n_steps,),
            in_specs=[
                pl.BlockSpec((tile_b, s_size), lambda i: (i, 0)),    # s batch tile
                pl.BlockSpec((tile_b, a_size), lambda i: (i, 0)),    # a batch tile
                pl.BlockSpec((HIDDEN, s_size), lambda i: (0, 0)),    # w1 (resident)
                pl.BlockSpec((HIDDEN, a_size), lambda i: (0, 0)),    # w2 (resident)
                pl.BlockSpec((HIDDEN, 1), lambda i: (0, 0)),         # b1 + b2 (resident)
                pl.BlockSpec((HIDDEN, 1), lambda i: (0, 0)),         # w3 (resident)
                pl.BlockSpec(memory_space=pltpu.MemorySpace.SMEM),   # b3 scalar
            ],
            out_specs=pl.BlockSpec((1, tile_b), lambda i: (0, i)),
        ),
        compiler_params=pltpu.CompilerParams(
            dimension_semantics=("parallel",),      # megacore sharding on v7x
            vmem_limit_bytes=VMEM_LIMIT_BYTES,      # above v5e's 16 MiB scoped default
        ),
        cost_estimate=pl.CostEstimate(
            flops=flops, transcendentals=0, bytes_accessed=bytes_accessed
        ),
    )(s_c, a_c, w1_c, w2_c, b_h, w3_col, b3_s)

    return out[0, :B].reshape(B, 1)


def init_critic_params(key, s_size, a_size):
    """Parameter init mirroring the PyTorch module (PyTorch [out, in] layout).

    Weights ~ Normal(0, 0.1); biases use PyTorch's default Linear init:
    Uniform(-1/sqrt(fan_in), 1/sqrt(fan_in)).
    """
    k1, k2, k3, kb1, kb2, kb3 = jax.random.split(key, 6)
    w1 = 0.1 * jax.random.normal(k1, (HIDDEN, s_size), jnp.float32)
    w2 = 0.1 * jax.random.normal(k2, (HIDDEN, a_size), jnp.float32)
    w3 = 0.1 * jax.random.normal(k3, (1, HIDDEN), jnp.float32)

    bnd1 = 1.0 / jnp.sqrt(float(s_size))
    bnd2 = 1.0 / jnp.sqrt(float(a_size))
    bnd3 = 1.0 / jnp.sqrt(float(HIDDEN))
    b1 = jax.random.uniform(kb1, (HIDDEN,), jnp.float32, -bnd1, bnd1)
    b2 = jax.random.uniform(kb2, (HIDDEN,), jnp.float32, -bnd2, bnd2)
    b3 = jax.random.uniform(kb3, (1,), jnp.float32, -bnd3, bnd3)
    return (w1, b1, w2, b2, w3, b3)


def critic_reference(s, a, params):
    """Pure-JAX reference for correctness checking."""
    w1, b1, w2, b2, w3, b3 = params
    q = jnp.maximum(
        s.astype(jnp.float32) @ w1.T + b1 + a.astype(jnp.float32) @ w2.T + b2, 0.0
    )
    return q @ w3.T + b3


if __name__ == "__main__":
    key = jax.random.PRNGKey(0)
    B, S_SIZE, A_SIZE = 2, 16, 8

    kp, ks, ka = jax.random.split(key, 3)
    params = init_critic_params(kp, S_SIZE, A_SIZE)
    s = jax.random.normal(ks, (B, S_SIZE), jnp.float32)
    a = jax.random.normal(ka, (B, A_SIZE), jnp.float32)

    out = critic_forward(s, a, params)
    jax.block_until_ready(out)
    ref = critic_reference(s, a, params)
    assert out.shape == (B, 1), out.shape
    assert jnp.allclose(out, ref, atol=1e-4, rtol=1e-4), (out, ref)

    # A larger, uneven batch with an explicit small tile: multi-step grid and
    # the ragged-padding path.
    B2 = 300
    ks2, ka2 = jax.random.split(jax.random.PRNGKey(1), 2)
    s2 = jax.random.normal(ks2, (B2, S_SIZE), jnp.float32)
    a2 = jax.random.normal(ka2, (B2, A_SIZE), jnp.float32)
    out2 = critic_forward(s2, a2, params, tile_b=128)
    jax.block_until_ready(out2)
    ref2 = critic_reference(s2, a2, params)
    assert out2.shape == (B2, 1), out2.shape
    assert jnp.allclose(out2, ref2, atol=1e-4, rtol=1e-4), (out2, ref2)

    # Same batch with the default tile: exercises the >=2-grid-step split and
    # the tile-clamping logic.
    out3 = critic_forward(s2, a2, params)
    jax.block_until_ready(out3)
    assert out3.shape == (B2, 1), out3.shape
    assert jnp.allclose(out3, ref2, atol=1e-4, rtol=1e-4), (out3, ref2)

    print("KERNEL_OK")
</pallas_src>

<mosaic_0001>
module attributes {stable_mosaic.version = 11 : i64} {
  func.func @_critic_kernel(%arg0: i32, %arg1: memref<128x16xf32, #tpu.memory_space<vmem>>, %arg2: memref<128x8xf32, #tpu.memory_space<vmem>>, %arg3: memref<10x16xf32, #tpu.memory_space<vmem>>, %arg4: memref<10x8xf32, #tpu.memory_space<vmem>>, %arg5: memref<10x1xf32, #tpu.memory_space<vmem>>, %arg6: memref<10x1xf32, #tpu.memory_space<vmem>>, %arg7: memref<1xf32, #tpu.memory_space<smem>>, %arg8: memref<1x128xf32, #tpu.memory_space<vmem>>) attributes {dimension_semantics = [#tpu.dimension_semantics<parallel>], iteration_bounds = array<i64: 1>, scalar_prefetch = 0 : i64, scratch_operands = 0 : i64, tpu.core_type = #tpu.core_type<tc>, window_params = [{transform_indices = @transform_0, window_bounds = array<i64: 128, 16>}, {transform_indices = @transform_1, window_bounds = array<i64: 128, 8>}, {pipeline_mode = #tpu.pipeline_mode<synchronous>, transform_indices = @transform_2, window_bounds = array<i64: 10, 16>}, {pipeline_mode = #tpu.pipeline_mode<synchronous>, transform_indices = @transform_3, window_bounds = array<i64: 10, 8>}, {pipeline_mode = #tpu.pipeline_mode<synchronous>, transform_indices = @transform_4, window_bounds = array<i64: 10, 1>}, {pipeline_mode = #tpu.pipeline_mode<synchronous>, transform_indices = @transform_5, window_bounds = array<i64: 10, 1>}, {transform_indices = @transform_6, window_bounds = array<i64: 1>}, {transform_indices = @transform_7, window_bounds = array<i64: 1, 128>}]} {
    %c0 = arith.constant 0 : index
    %c0_0 = arith.constant 0 : index
    %0 = vector.load %arg3[%c0, %c0_0] : memref<10x16xf32, #tpu.memory_space<vmem>>, vector<10x16xf32>
    %c0_1 = arith.constant 0 : index
    %c0_2 = arith.constant 0 : index
    %1 = vector.load %arg1[%c0_1, %c0_2] : memref<128x16xf32, #tpu.memory_space<vmem>>, vector<128x16xf32>
    %cst = arith.constant dense<0.000000e+00> : vector<10x128xf32>
    %2 = tpu.matmul %0, %1, %cst {dimension_numbers = #tpu.dot_dimension_numbers<[1], [1], [0], [0], [0, 0, 1, 0], [], []>} : vector<10x16xf32>, vector<128x16xf32>, vector<10x128xf32> -> vector<10x128xf32>
    %c0_3 = arith.constant 0 : index
    %c0_4 = arith.constant 0 : index
    %3 = vector.load %arg4[%c0_3, %c0_4] : memref<10x8xf32, #tpu.memory_space<vmem>>, vector<10x8xf32>
    %c0_5 = arith.constant 0 : index
    %c0_6 = arith.constant 0 : index
    %4 = vector.load %arg2[%c0_5, %c0_6] : memref<128x8xf32, #tpu.memory_space<vmem>>, vector<128x8xf32>
    %cst_7 = arith.constant dense<0.000000e+00> : vector<10x128xf32>
    %5 = tpu.matmul %3, %4, %cst_7 {dimension_numbers = #tpu.dot_dimension_numbers<[1], [1], [0], [0], [0, 0, 1, 0], [], []>} : vector<10x8xf32>, vector<128x8xf32>, vector<10x128xf32> -> vector<10x128xf32>
    %6 = arith.addf %2, %5 : vector<10x128xf32>
    %c0_8 = arith.constant 0 : index
    %c0_9 = arith.constant 0 : index
    %7 = vector.load %arg5[%c0_8, %c0_9] : memref<10x1xf32, #tpu.memory_space<vmem>>, vector<10x1xf32>
    %8 = vector.broadcast %7 : vector<10x1xf32> to vector<10x128xf32>
    %9 = arith.addf %6, %8 : vector<10x128xf32>
    %cst_10 = arith.constant 0.000000e+00 : f32
    %10 = vector.broadcast %cst_10 : f32 to vector<10x128xf32>
    %11 = arith.maximumf %9, %10 : vector<10x128xf32>
    %c0_11 = arith.constant 0 : index
    %c0_12 = arith.constant 0 : index
    %12 = vector.load %arg6[%c0_11, %c0_12] : memref<10x1xf32, #tpu.memory_space<vmem>>, vector<10x1xf32>
    %13 = vector.broadcast %12 : vector<10x1xf32> to vector<10x128xf32>
    %14 = arith.mulf %11, %13 : vector<10x128xf32>
    %cst_13 = arith.constant dense<0.000000e+00> : vector<128xf32>
    %15 = vector.multi_reduction <add>, %14, %cst_13 [0] : vector<10x128xf32> to vector<128xf32>
    %16 = vector.shape_cast %15 : vector<128xf32> to vector<1x128xf32>
    %c0_14 = arith.constant 0 : index
    %17 = memref.load %arg7[%c0_14] : memref<1xf32, #tpu.memory_space<smem>>
    %18 = vector.broadcast %17 : f32 to vector<1x128xf32>
    %19 = arith.addf %16, %18 : vector<1x128xf32>
    %c0_15 = arith.constant 0 : index
    %c0_16 = arith.constant 0 : index
    %20 = vector.load %arg8[%c0_15, %c0_16] : memref<1x128xf32, #tpu.memory_space<vmem>>, vector<1x128xf32>
    tpu.vector_store %arg8[%c0_15, %c0_16], %19 {strides = array<i32>} : memref<1x128xf32, #tpu.memory_space<vmem>>, vector<1x128xf32>,
    return
  }
  func.func @transform_0(%arg0: i32) -> (i32, i32) {
    %c0_i32 = arith.constant 0 : i32
    %c0_i32_0 = arith.constant 0 : i32
    return %arg0, %c0_i32 : i32, i32
  }
  func.func @transform_1(%arg0: i32) -> (i32, i32) {
    %c0_i32 = arith.constant 0 : i32
    %c0_i32_0 = arith.constant 0 : i32
    return %arg0, %c0_i32 : i32, i32
  }
  func.func @transform_2(%arg0: i32) -> (i32, i32) {
    %c0_i32 = arith.constant 0 : i32
    %c0_i32_0 = arith.constant 0 : i32
    %c0_i32_1 = arith.constant 0 : i32
    return %c0_i32, %c0_i32_0 : i32, i32
  }
  func.func @transform_3(%arg0: i32) -> (i32, i32) {
    %c0_i32 = arith.constant 0 : i32
    %c0_i32_0 = arith.constant 0 : i32
    %c0_i32_1 = arith.constant 0 : i32
    return %c0_i32, %c0_i32_0 : i32, i32
  }
  func.func @transform_4(%arg0: i32) -> (i32, i32) {
    %c0_i32 = arith.constant 0 : i32
    %c0_i32_0 = arith.constant 0 : i32
    %c0_i32_1 = arith.constant 0 : i32
    return %c0_i32, %c0_i32_0 : i32, i32
  }
  func.func @transform_5(%arg0: i32) -> (i32, i32) {
    %c0_i32 = arith.constant 0 : i32
    %c0_i32_0 = arith.constant 0 : i32
    %c0_i32_1 = arith.constant 0 : i32
    return %c0_i32, %c0_i32_0 : i32, i32
  }
  func.func @transform_6(%arg0: i32) -> i32 {
    %c0_i32 = arith.constant 0 : i32
    %c0_i32_0 = arith.constant 0 : i32
    return %c0_i32 : i32
  }
  func.func @transform_7(%arg0: i32) -> (i32, i32) {
    %c0_i32 = arith.constant 0 : i32
    %c0_i32_0 = arith.constant 0 : i32
    return %c0_i32, %arg0 : i32, i32
  }
}

</mosaic_0001>

<llo_original>
// kernel: critic_forward.1
$region0: #{critic_forward.1}
  #allocation0 [shape = 'u32[]', space=smem, size = 0x4, offset = 0x4, fixed_abs, tag = 'smem constant byte address 0x4 - core index']
  #allocation1 [shape = 'u32[144,128]{1,0:T(1,128)}', space=vmem, size = 0x12000, scoped, tag = 'internal scratch']
  #allocation2 [shape = 'f32[1]{0:T(128)S(6)}', space=smem, size = 0x200, scoped, tag = 'scoped memory for critic_forward.1']
  %s0 = inlined_call_operand.vmem [shape: f32[128,16], index: 0, kind: input, shape index: {}]
  %s1 = inlined_call_operand.vmem [shape: f32[128,8], index: 1, kind: input, shape index: {}]
  %s2 = inlined_call_operand.vmem [shape: f32[10,16], index: 2, kind: input, shape index: {}]
  %s3 = inlined_call_operand.vmem [shape: f32[10,8], index: 3, kind: input, shape index: {}]
  %s4 = inlined_call_operand.vmem [shape: f32[10,1], index: 4, kind: input, shape index: {}]
  %s5 = inlined_call_operand.vmem [shape: f32[10,1], index: 5, kind: input, shape index: {}]
  %s6 = inlined_call_operand.<no memory space> [shape: f32[1], index: 6, kind: input, shape index: {}]
  %s7 = inlined_call_operand.vmem [shape: f32[1,128], index: 7, kind: output, shape index: {}]
  %s8 = sld [smem:[#allocation0]]
  $region38: #{critic_forward.1} parent=0
    _
  %s10 = ssub.s32 1, %s8
  %s11 = scalar_select 0, %s10, %s8
  %12 = sst [smem:[#allocation2]] %s6
  // Predicated region
  $region2: #{critic_forward.1} parent=0 // pred_check
    _
  $region3: #{critic_forward.1} parent=0 // pred_check_branch
    %14 = sbr.rel (0) target = $region5
  $region4: #{critic_forward.1} parent=0 // pred_region
    _
  $region5: #{critic_forward.1} parent=0 // pred_fallthru
    _
  // Predicated region
  $region6: #{critic_forward.1} parent=0 // pred_check
    _
  $region7: #{critic_forward.1} parent=0 // pred_check_branch
    %16 = sbr.rel (0) target = $region9
  $region8: #{critic_forward.1} parent=0 // pred_region
    _
  $region9: #{critic_forward.1} parent=0 // pred_fallthru
    _
  // Predicated region
  $region10: #{critic_forward.1} parent=0 // pred_check
    _
  $region11: #{critic_forward.1} parent=0 // pred_check_branch
    %18 = sbr.rel (0) target = $region13
  $region12: #{critic_forward.1} parent=0 // pred_region
    _
  $region13: #{critic_forward.1} parent=0 // pred_fallthru
    _
  // Predicated region
  $region14: #{critic_forward.1} parent=0 // pred_check
    _
  $region15: #{critic_forward.1} parent=0 // pred_check_branch
    %20 = sbr.rel (0) target = $region17
  $region16: #{critic_forward.1} parent=0 // pred_region
    _
  $region17: #{critic_forward.1} parent=0 // pred_fallthru
    _
  // Predicated region
  $region18: #{critic_forward.1} parent=0 // pred_check
    _
  $region19: #{critic_forward.1} parent=0 // pred_check_branch
    %22 = sbr.rel (0) target = $region21
  $region20: #{critic_forward.1} parent=0 // pred_region
    _
  $region21: #{critic_forward.1} parent=0 // pred_fallthru
    _
  // Predicated region
  $region22: #{critic_forward.1} parent=0 // pred_check
    _
  $region23: #{critic_forward.1} parent=0 // pred_check_branch
    %24 = sbr.rel (0) target = $region25
  $region24: #{critic_forward.1} parent=0 // pred_region
    _
  $region25: #{critic_forward.1} parent=0 // pred_fallthru
    _
  // Predicated region
  $region26: #{critic_forward.1} parent=0 // pred_check
    _
  $region27: #{critic_forward.1} parent=0 // pred_check_branch
    %26 = sbr.rel (0) target = $region29
  $region28: #{critic_forward.1} parent=0 // pred_region
    _
  $region29: #{critic_forward.1} parent=0 // pred_fallthru
    _
  %v27 = vld [vmem:[%s2] sm:$0xff]
  %v28 = vld [vmem:[%s2 + $0x8] sm:$0x3]
  %v29 = vld [vmem:[%s0] sm:$0xff]
  %v30 = vld [vmem:[%s0 + $0x8] sm:$0xff]
  %v31 = vld [vmem:[%s0 + $0x10] sm:$0xff]
  %v32 = vld [vmem:[%s0 + $0x18] sm:$0xff]
  %v33 = vld [vmem:[%s0 + $0x20] sm:$0xff]
  %v34 = vld [vmem:[%s0 + $0x28] sm:$0xff]
  %v35 = vld [vmem:[%s0 + $0x30] sm:$0xff]
  %v36 = vld [vmem:[%s0 + $0x38] sm:$0xff]
  %v37 = vld [vmem:[%s0 + $0x40] sm:$0xff]
  %v38 = vld [vmem:[%s0 + $0x48] sm:$0xff]
  %v39 = vld [vmem:[%s0 + $0x50] sm:$0xff]
  %v40 = vld [vmem:[%s0 + $0x58] sm:$0xff]
  %v41 = vld [vmem:[%s0 + $0x60] sm:$0xff]
  %v42 = vld [vmem:[%s0 + $0x68] sm:$0xff]
  %v43 = vld [vmem:[%s0 + $0x70] sm:$0xff]
  %v44 = vld [vmem:[%s0 + $0x78] sm:$0xff]
  %v45 = vld [vmem:[%s3] sm:$0xff]
  %v46 = vld [vmem:[%s3 + $0x8] sm:$0x3]
  %v47 = vld [vmem:[%s1] sm:$0xff]
  %v48 = vld [vmem:[%s1 + $0x8] sm:$0xff]
  %v49 = vld [vmem:[%s1 + $0x10] sm:$0xff]
  %v50 = vld [vmem:[%s1 + $0x18] sm:$0xff]
  %v51 = vld [vmem:[%s1 + $0x20] sm:$0xff]
  %v52 = vld [vmem:[%s1 + $0x28] sm:$0xff]
  %v53 = vld [vmem:[%s1 + $0x30] sm:$0xff]
  %v54 = vld [vmem:[%s1 + $0x38] sm:$0xff]
  %v55 = vld [vmem:[%s1 + $0x40] sm:$0xff]
  %v56 = vld [vmem:[%s1 + $0x48] sm:$0xff]
  %v57 = vld [vmem:[%s1 + $0x50] sm:$0xff]
  %v58 = vld [vmem:[%s1 + $0x58] sm:$0xff]
  %v59 = vld [vmem:[%s1 + $0x60] sm:$0xff]
  %v60 = vld [vmem:[%s1 + $0x68] sm:$0xff]
  %v61 = vld [vmem:[%s1 + $0x70] sm:$0xff]
  %v62 = vld [vmem:[%s1 + $0x78] sm:$0xff]
  %vm63 = vcmask 64512
  %v65 = vsel %vm63, %v45, 0
  %v68 = vsel %vm63, %v46, 0
  %v71 = vsel %vm63, %v47, 0
  %v74 = vsel %vm63, %v48, 0
  %v77 = vsel %vm63, %v49, 0
  %v80 = vsel %vm63, %v50, 0
  %v83 = vsel %vm63, %v51, 0
  %v86 = vsel %vm63, %v52, 0
  %v89 = vsel %vm63, %v53, 0
  %v92 = vsel %vm63, %v54, 0
  %v95 = vsel %vm63, %v55, 0
  %v98 = vsel %vm63, %v56, 0
  %v101 = vsel %vm63, %v57, 0
  %v104 = vsel %vm63, %v58, 0
  %v107 = vsel %vm63, %v59, 0
  %v110 = vsel %vm63, %v60, 0
  %v113 = vsel %vm63, %v61, 0
  %v116 = vsel %vm63, %v62, 0
  %118 = vmatprep.subr.mxu0 0.0
  %119 = vmatpush1.xpose.msra.mxu0 %v71
  %120 = vmatprep.subr.mxu0 0.0
  %121 = vmatpush1.xpose.msra.mxu0 %v74
  %122 = vmatprep.subr.mxu0 0.0
  %123 = vmatpush1.xpose.msra.mxu0 %v77
  %124 = vmatprep.subr.mxu0 0.0
  %125 = vmatpush1.xpose.msra.mxu0 %v80
  %126 = vmatprep.subr.mxu0 0.0
  %127 = vmatpush1.xpose.msra.mxu0 %v83
  %128 = vmatprep.subr.mxu0 0.0
  %129 = vmatpush1.xpose.msra.mxu0 %v86
  %130 = vmatprep.subr.mxu0 0.0
  %131 = vmatpush1.xpose.msra.mxu0 %v89
  %132 = vmatprep.subr.mxu0 0.0
  %133 = vmatpush1.xpose.msra.mxu0 %v92
  %134 = vmatprep.subr.mxu0 0.0
  %135 = vmatpush1.xpose.msra.mxu0 %v95
  %136 = vmatprep.subr.mxu0 0.0
  %137 = vmatpush1.xpose.msra.mxu0 %v98
  %138 = vmatprep.subr.mxu0 0.0
  %139 = vmatpush1.xpose.msra.mxu0 %v101
  %140 = vmatprep.subr.mxu0 0.0
  %141 = vmatpush1.xpose.msra.mxu0 %v104
  %142 = vmatprep.subr.mxu0 0.0
  %143 = vmatpush1.xpose.msra.mxu0 %v107
  %144 = vmatprep.subr.mxu0 0.0
  %145 = vmatpush1.xpose.msra.mxu0 %v110
  %146 = vmatprep.subr.mxu0 0.0
  %147 = vmatpush1.xpose.msra.mxu0 %v113
  %148 = vmatprep.subr.mxu0 0.0
  %149 = vmatpush1.xpose.msra.mxu0 %v116
  %150 = vmatprep.subr.mxu0 0.0
  %151 = vmatpush1.xpose.msra.mxu0 0.0
  %152 = vmatprep.subr.mxu0 0.0
  %153 = vmatpush1.xpose.msra.mxu0 0.0
  %154 = vmatprep.subr.mxu0 0.0
  %155 = vmatpush1.xpose.msra.mxu0 0.0
  %156 = vmatprep.subr.mxu0 0.0
  %157 = vmatpush1.xpose.msra.mxu0 0.0
  %158 = vmatprep.subr.mxu0 0.0
  %159 = vmatpush1.xpose.msra.mxu0 0.0
  %160 = vmatprep.subr.mxu0 0.0
  %161 = vmatpush1.xpose.msra.mxu0 0.0
  %162 = vmatprep.subr.mxu0 0.0
  %163 = vmatpush1.xpose.msra.mxu0 0.0
  %164 = vmatprep.subr.mxu0 0.0
  %165 = vmatpush1.xpose.msra.mxu0 0.0
  %166 = vmatprep.subr.mxu0 0.0
  %167 = vmatpush1.xpose.msra.mxu0 0.0
  %168 = vmatprep.subr.mxu0 0.0
  %169 = vmatpush1.xpose.msra.mxu0 0.0
  %170 = vmatprep.subr.mxu0 0.0
  %171 = vmatpush1.xpose.msra.mxu0 0.0
  %172 = vmatprep.subr.mxu0 0.0
  %173 = vmatpush1.xpose.msra.mxu0 0.0
  %174 = vmatprep.subr.mxu0 0.0
  %175 = vmatpush1.xpose.msra.mxu0 0.0
  %176 = vmatprep.subr.mxu0 0.0
  %177 = vmatpush1.xpose.msra.mxu0 0.0
  %178 = vmatprep.subr.mxu0 0.0
  %179 = vmatpush1.xpose.msra.mxu0 0.0
  %180 = vmatprep.subr.mxu0 0.0
  %181 = vmatpush1.xpose.msra.mxu0 0.0
  %182 = vmatprep.mubr.f32.mxu0 0.0
  %183 = vmatmul.mubr.f32.gmra.mrb[0].mxu0 %v65
  %v184 = vpop.f32.mrb[0].mxu0
  %v185 = vadd.f32 0.0, %v184
  %v186 = vpop.f32.mrb[0].mxu0
  %187 = vmatprep.mubr.f32.mxu0 0.0
  %188 = vmatmul.mubr.f32.gmra.mrb[0].mxu0 %v68
  %v189 = vpop.f32.mrb[0].mxu0
  %v190 = vadd.f32 0.0, %v189
  %v191 = vpop.f32.mrb[0].mxu0
  %192 = vdwg.mxu0
  %vm193 = vcmask 130048
  %v195 = vsel %vm193, %v27, 0
  %v198 = vsel %vm193, %v28, 0
  %v201 = vsel %vm193, %v29, 0
  %v204 = vsel %vm193, %v30, 0
  %v207 = vsel %vm193, %v31, 0
  %v210 = vsel %vm193, %v32, 0
  %v213 = vsel %vm193, %v33, 0
  %v216 = vsel %vm193, %v34, 0
  %v219 = vsel %vm193, %v35, 0
  %v222 = vsel %vm193, %v36, 0
  %v225 = vsel %vm193, %v37, 0
  %v228 = vsel %vm193, %v38, 0
  %v231 = vsel %vm193, %v39, 0
  %v234 = vsel %vm193, %v40, 0
  %v237 = vsel %vm193, %v41, 0
  %v240 = vsel %vm193, %v42, 0
  %v243 = vsel %vm193, %v43, 0
  %v246 = vsel %vm193, %v44, 0
  %248 = vmatprep.subr.mxu0 0.0
  %249 = vmatpush1.xpose.msra.mxu0 %v201
  %250 = vmatprep.subr.mxu0 0.0
  %251 = vmatpush1.xpose.msra.mxu0 %v204
  %252 = vmatprep.subr.mxu0 0.0
  %253 = vmatpush1.xpose.msra.mxu0 %v207
  %254 = vmatprep.subr.mxu0 0.0
  %255 = vmatpush1.xpose.msra.mxu0 %v210
  %256 = vmatprep.subr.mxu0 0.0
  %257 = vmatpush1.xpose.msra.mxu0 %v213
  %258 = vmatprep.subr.mxu0 0.0
  %259 = vmatpush1.xpose.msra.mxu0 %v216
  %260 = vmatprep.subr.mxu0 0.0
  %261 = vmatpush1.xpose.msra.mxu0 %v219
  %262 = vmatprep.subr.mxu0 0.0
  %263 = vmatpush1.xpose.msra.mxu0 %v222
  %264 = vmatprep.subr.mxu0 0.0
  %265 = vmatpush1.xpose.msra.mxu0 %v225
  %266 = vmatprep.subr.mxu0 0.0
  %267 = vmatpush1.xpose.msra.mxu0 %v228
  %268 = vmatprep.subr.mxu0 0.0
  %269 = vmatpush1.xpose.msra.mxu0 %v231
  %270 = vmatprep.subr.mxu0 0.0
  %271 = vmatpush1.xpose.msra.mxu0 %v234
  %272 = vmatprep.subr.mxu0 0.0
  %273 = vmatpush1.xpose.msra.mxu0 %v237
  %274 = vmatprep.subr.mxu0 0.0
  %275 = vmatpush1.xpose.msra.mxu0 %v240
  %276 = vmatprep.subr.mxu0 0.0
  %277 = vmatpush1.xpose.msra.mxu0 %v243
  %278 = vmatprep.subr.mxu0 0.0
  %279 = vmatpush1.xpose.msra.mxu0 %v246
  %280 = vmatprep.subr.mxu0 0.0
  %281 = vmatpush1.xpose.msra.mxu0 0.0
  %282 = vmatprep.subr.mxu0 0.0
  %283 = vmatpush1.xpose.msra.mxu0 0.0
  %284 = vmatprep.subr.mxu0 0.0
  %285 = vmatpush1.xpose.msra.mxu0 0.0
  %286 = vmatprep.subr.mxu0 0.0
  %287 = vmatpush1.xpose.msra.mxu0 0.0
  %288 = vmatprep.subr.mxu0 0.0
  %289 = vmatpush1.xpose.msra.mxu0 0.0
  %290 = vmatprep.subr.mxu0 0.0
  %291 = vmatpush1.xpose.msra.mxu0 0.0
  %292 = vmatprep.subr.mxu0 0.0
  %293 = vmatpush1.xpose.msra.mxu0 0.0
  %294 = vmatprep.subr.mxu0 0.0
  %295 = vmatpush1.xpose.msra.mxu0 0.0
  %296 = vmatprep.subr.mxu0 0.0
  %297 = vmatpush1.xpose.msra.mxu0 0.0
  %298 = vmatprep.subr.mxu0 0.0
  %299 = vmatpush1.xpose.msra.mxu0 0.0
  %300 = vmatprep.subr.mxu0 0.0
  %301 = vmatpush1.xpose.msra.mxu0 0.0
  %302 = vmatprep.subr.mxu0 0.0
  %303 = vmatpush1.xpose.msra.mxu0 0.0
  %304 = vmatprep.subr.mxu0 0.0
  %305 = vmatpush1.xpose.msra.mxu0 0.0
  %306 = vmatprep.subr.mxu0 0.0
  %307 = vmatpush1.xpose.msra.mxu0 0.0
  %308 = vmatprep.subr.mxu0 0.0
  %309 = vmatpush1.xpose.msra.mxu0 0.0
  %310 = vmatprep.subr.mxu0 0.0
  %311 = vmatpush1.xpose.msra.mxu0 0.0
  %312 = vmatprep.mubr.f32.mxu0 0.0
  %313 = vmatmul.mubr.f32.gmra.mrb[0].mxu0 %v195
  %v314 = vpop.f32.mrb[0].mxu0
  %v315 = vadd.f32 %v185, %v314
  %v316 = vpop.f32.mrb[0].mxu0
  %317 = vmatprep.mubr.f32.mxu0 0.0
  %318 = vmatmul.mubr.f32.gmra.mrb[0].mxu0 %v198
  %v319 = vpop.f32.mrb[0].mxu0
  %v320 = vadd.f32 %v190, %v319
  %v321 = vpop.f32.mrb[0].mxu0
  %322 = vdwg.mxu0
  %v323 = vld [vmem:[%s4] sm:$0xff]
  %v324 = vld [vmem:[%s4 + $0x8] sm:$0x3]
  %326 = vset.pattern.permute.xlu0 0
  %327 = vperm.xlu0 %326, %v323
  %v328 = vpop.permute.xlu0 %327
  %331 = vset.pattern.permute.xlu0 0
  %332 = vperm.xlu0 %331, %v324
  %v333 = vpop.permute.xlu0 %332
  %v335 = vadd.f32 %v315, %v328
  %v336 = vadd.f32 %v320, %v333
  %v337 = vmax.f32 %v335, 0.0
  %v338 = vmax.f32 %v336, 0.0
  %v339 = vld [vmem:[%s5] sm:$0xff]
  %v340 = vld [vmem:[%s5 + $0x8] sm:$0x3]
  %342 = vset.pattern.permute.xlu0 0
  %343 = vperm.xlu0 %342, %v339
  %v344 = vpop.permute.xlu0 %343
  %347 = vset.pattern.permute.xlu0 0
  %348 = vperm.xlu0 %347, %v340
  %v349 = vpop.permute.xlu0 %348
  %v351 = vmul.f32 %v337, %v344
  %v352 = vmul.f32 %v338, %v349
  %vm353 = vcmask 1041408
  %v354 = vsel %vm353, %v352, 0.0
  %v355 = vadd.f32 %v351, %v354
  %v356 = vrot.slane %v355, 4
  %v357 = vadd.f32 %v355, %v356
  %v358 = vrot.slane %v357, 2
  %v359 = vadd.f32 %v357, %v358
  %v360 = vrot.slane %v359, 1
  %v361 = vadd.f32 %v359, %v360
  %s362 = sld [smem:[#allocation2]]
  %v363 = vstv %s362
  %v364 = vadd.f32 %v361, %v363
  %365 = vst [vmem:[%s7] sm:$0x1] %v364
  // Predicated region
  $region30: #{critic_forward.1} parent=0 // pred_check
    _
  $region31: #{critic_forward.1} parent=0 // pred_check_branch
    %367 = sbr.rel (0) target = $region33
  $region32: #{critic_forward.1} parent=0 // pred_region
    _
  $region33: #{critic_forward.1} parent=0 // pred_fallthru
    _
  // Predicated region
  $region34: #{critic_forward.1} parent=0 // pred_check
    _
  $region35: #{critic_forward.1} parent=0 // pred_check_branch
    %369 = sbr.rel (0) target = $region37
  $region36: #{critic_forward.1} parent=0 // pred_region
    _
  $region37: #{critic_forward.1} parent=0 // pred_fallthru
    _

</llo_original>
